<compile_context>
chip_gen: v5e
topology: v5e:2x2
jax: 0.10.0
libtpu: 0.0.40
codegen_flags: <defaults>
</compile_context>

<pallas_src>
import functools
import math

import jax
import jax.numpy as jnp
from jax.experimental import pallas as pl
from jax.experimental.pallas import tpu as pltpu


def _embed_ln_kernel(x_ref, w_ref, p_ref, avg_ref, o_ref, *, eps):
    """Linear + LayerNorm on a lane-packed tile.

    x_ref   : (tile_p, pack*input_size)   lane-packed input rows
    w_ref   : (pack*input_size, pack*embed_dim)  block-diag, mean-centered weights
    p_ref   : (3, pack*embed_dim)          [centered bias; gamma; beta]
    avg_ref : (pack*embed_dim, pack*embed_dim) block-diag per-segment averaging matrix
    o_ref   : (tile_p, pack*embed_dim)
    """
    # Centering is folded into w_ref/bias host-side, so this IS the centered
    # activation c = (xW + b) - mean_seg(xW + b).  f32 accumulation on the MXU.
    c = jnp.dot(x_ref[...], w_ref[...], preferred_element_type=jnp.float32)
    c = c + p_ref[0:1, :]

    # Per-segment variance broadcast back to every lane of its segment via one
    # lane-dense MXU matmul (replaces 32-lane slices + XLU means + concat).
    var = jnp.dot(c * c, avg_ref[...], preferred_element_type=jnp.float32)

    # NOTE: masked tail blocks may hold garbage rows here (rsqrt of junk); those
    # rows are never stored, so this is benign.
    o_ref[...] = (c * jax.lax.rsqrt(var + eps) * p_ref[1:2, :]
                  + p_ref[2:3, :]).astype(o_ref.dtype)


def _round_up(x, m):
    return (x + m - 1) // m * m


def _choose_pack(input_size, embed_dim):
    """Row-folding factor making both kernel I/O last dims lane-dense (x128)."""
    p_in = 128 // math.gcd(128, input_size)
    p_out = 128 // math.gcd(128, embed_dim)
    for p in (math.lcm(p_in, p_out), p_out):
        w_bytes = (p * input_size) * (p * embed_dim) * 4
        avg_bytes = (p * embed_dim) * (p * embed_dim) * 4
        if 1 < p <= 16 and w_bytes <= (2 << 20) and avg_bytes <= (8 << 20):
            return p
    return 1


@functools.partial(jax.jit, static_argnames=("tile_rows", "lane_pack"))
def embedding_linear(x, w, b, gamma, beta, *, tile_rows=8192, lane_pack=True):
    """x: (..., input_size) -> (..., embed_dim) via Linear + LayerNorm ('linear' mode)."""
    lead = x.shape[:-1]
    input_size = x.shape[-1]
    embed_dim = w.shape[1]
    rows = math.prod(lead)
    f32 = jnp.float32

    # --- lane packing (pad row count to a pack multiple; never fall back sparse) ---
    pack = _choose_pack(input_size, embed_dim) if lane_pack else 1
    rows_p = _round_up(rows, pack)
    x2 = x.reshape(rows, input_size)
    if rows_p != rows:
        # Tiny zero-pad keeps the dense unmasked vld/vst path; LN on zero rows is
        # finite (rsqrt(eps)) and those rows are sliced away below.
        x2 = jnp.pad(x2, ((0, rows_p - rows), (0, 0)))
    R = rows_p // pack
    in_p, emb_p = pack * input_size, pack * embed_dim
    x_p = x2.reshape(R, in_p)                    # free: row-major contiguous

    # --- fold LayerNorm centering into the weights (exact identity) ---
    w32 = w.astype(f32)
    wc = w32 - jnp.mean(w32, axis=1, keepdims=True)
    bc = b.astype(f32) - jnp.mean(b.astype(f32))
    w_big = wc if pack == 1 else jnp.kron(jnp.eye(pack, dtype=f32), wc)
    w_big = w_big.astype(x.dtype)                # match x dtype for the MXU dot
    # Block-diagonal per-segment averaging matrix for the variance matmul.
    avg_mat = jnp.kron(jnp.eye(pack, dtype=f32),
                       jnp.full((embed_dim, embed_dim), 1.0 / embed_dim, dtype=f32))
    params = jnp.stack([jnp.tile(bc, pack),
                        jnp.tile(gamma.astype(f32), pack),
                        jnp.tile(beta.astype(f32), pack)])

    # --- generation-aware tile sizing / VMEM budget ---
    try:
        vmem_bytes = int(pltpu.get_tpu_info().vmem_capacity_bytes)
    except Exception:
        vmem_bytes = 0
    if vmem_bytes <= 0:
        vmem_bytes = 64 * 1024 * 1024            # conservative (v7x per-TC physical)

    resident = (w_big.size * w_big.dtype.itemsize
                + avg_mat.size * 4 + params.size * 4)
    row_bytes = in_p * x.dtype.itemsize + emb_p * 4   # one packed row: in + out
    tile_budget = max(int(0.40 * vmem_bytes) - resident, 16 * row_bytes)
    vmem_cap_rows = max(8, (tile_budget // (2 * row_bytes)) // 8 * 8)
    tile_p = min(_round_up(max(1, tile_rows // pack), 8), vmem_cap_rows)
    if tile_p >= R:
        tile_p = R                               # single full-extent block (legal)
    grid = (pl.cdiv(R, tile_p),)                 # no bulk pad: Pallas handles tail block
    vmem_limit = max(32 * 1024 * 1024, int(0.75 * vmem_bytes))

    kernel = functools.partial(_embed_ln_kernel, eps=1e-5)
    cost = pl.CostEstimate(
        flops=2 * R * in_p * emb_p + 2 * R * emb_p * emb_p,
        transcendentals=rows_p,
        bytes_accessed=(x_p.size * x.dtype.itemsize + R * emb_p * 4 + resident),
    )

    out_p = pl.pallas_call(
        kernel,
        out_shape=jax.ShapeDtypeStruct((R, emb_p), f32),
        grid_spec=pltpu.PrefetchScalarGridSpec(
            num_scalar_prefetch=0,
            grid=grid,
            in_specs=[
                pl.BlockSpec((tile_p, in_p), lambda i: (i, 0)),
                pl.BlockSpec((in_p, emb_p), lambda i: (0, 0)),   # constant index:
                pl.BlockSpec((3, emb_p), lambda i: (0, 0)),      # fetched once,
                pl.BlockSpec((emb_p, emb_p), lambda i: (0, 0)),  # resident operands
            ],
            out_specs=pl.BlockSpec((tile_p, emb_p), lambda i: (i, 0)),
        ),
        compiler_params=pltpu.CompilerParams(
            dimension_semantics=("parallel",),
            vmem_limit_bytes=vmem_limit,
        ),
        cost_estimate=cost,
    )(x_p, w_big, params, avg_mat)

    out = out_p.reshape(rows_p, embed_dim)
    if rows_p != rows:
        out = out[:rows]
    return out.reshape(lead + (embed_dim,))


def reference(x, w, b, gamma, beta):
    y = jnp.einsum("...i,ie->...e", x.astype(jnp.float32), w) + b
    mean = jnp.mean(y, axis=-1, keepdims=True)
    var = jnp.mean((y - mean) ** 2, axis=-1, keepdims=True)
    return (y - mean) / jnp.sqrt(var + 1e-5) * gamma + beta


# TODO(synk): 'cnn' and 'fft' modes reference `rearrange` (not imported in the original
# module) and 'fft' allocates a fresh nn.Linear per forward; only the default 'linear'
# mode is implemented here.

if __name__ == "__main__":
    key = jax.random.PRNGKey(0)
    batch, num_channels, seq_len = 2, 4, 8
    input_size, embed_dim = 16, 32

    k_x, k_w, k_b, k_g, k_be = jax.random.split(key, 5)
    x = jax.random.normal(k_x, (batch, num_channels, seq_len, input_size),
                          dtype=jnp.float32)

    # Deterministic params (nn.Linear uniform bound; non-trivial LayerNorm affine).
    bound = 1.0 / math.sqrt(input_size)
    w = jax.random.uniform(k_w, (input_size, embed_dim), jnp.float32, -bound, bound)
    b = jax.random.uniform(k_b, (embed_dim,), jnp.float32, -bound, bound)
    gamma = 1.0 + 0.1 * jax.random.normal(k_g, (embed_dim,), jnp.float32)
    beta = 0.1 * jax.random.normal(k_be, (embed_dim,), jnp.float32)

    try:
        out = jax.block_until_ready(embedding_linear(x, w, b, gamma, beta))
    except pltpu.LoweringException:
        # Narrow safety net: only if this toolchain cannot lower the packed
        # variant do we fall back to the plain per-row kernel.
        out = jax.block_until_ready(
            embedding_linear(x, w, b, gamma, beta, lane_pack=False))

    ref = reference(x, w, b, gamma, beta)
    assert out.shape == (batch, num_channels, seq_len, embed_dim)
    assert jnp.allclose(out, ref, atol=1e-4, rtol=1e-4), "mismatch vs reference"
    print("KERNEL_OK")
</pallas_src>

<mosaic_0001>
module attributes {stable_mosaic.version = 11 : i64} {
  func.func @_embed_ln_kernel(%arg0: i32, %arg1: memref<8x128xf32, #tpu.memory_space<vmem>>, %arg2: memref<128x256xf32, #tpu.memory_space<vmem>>, %arg3: memref<3x256xf32, #tpu.memory_space<vmem>>, %arg4: memref<256x256xf32, #tpu.memory_space<vmem>>, %arg5: memref<8x256xf32, #tpu.memory_space<vmem>>) attributes {dimension_semantics = [#tpu.dimension_semantics<parallel>], iteration_bounds = array<i64: 1>, scalar_prefetch = 0 : i64, scratch_operands = 0 : i64, tpu.core_type = #tpu.core_type<tc>, window_params = [{transform_indices = @transform_0, window_bounds = array<i64: 8, 128>}, {pipeline_mode = #tpu.pipeline_mode<synchronous>, transform_indices = @transform_1, window_bounds = array<i64: 128, 256>}, {pipeline_mode = #tpu.pipeline_mode<synchronous>, transform_indices = @transform_2, window_bounds = array<i64: 3, 256>}, {pipeline_mode = #tpu.pipeline_mode<synchronous>, transform_indices = @transform_3, window_bounds = array<i64: 256, 256>}, {transform_indices = @transform_4, window_bounds = array<i64: 8, 256>}]} {
    %c0 = arith.constant 0 : index
    %c0_0 = arith.constant 0 : index
    %0 = vector.load %arg1[%c0, %c0_0] : memref<8x128xf32, #tpu.memory_space<vmem>>, vector<8x128xf32>
    %c0_1 = arith.constant 0 : index
    %c0_2 = arith.constant 0 : index
    %1 = vector.load %arg2[%c0_1, %c0_2] : memref<128x256xf32, #tpu.memory_space<vmem>>, vector<128x256xf32>
    %cst = arith.constant dense<0.000000e+00> : vector<8x256xf32>
    %2 = tpu.matmul %0, %1, %cst {dimension_numbers = #tpu.dot_dimension_numbers<[1], [0], [0], [1], [0, 0, 1, 1], [], []>} : vector<8x128xf32>, vector<128x256xf32>, vector<8x256xf32> -> vector<8x256xf32>
    %c0_3 = arith.constant 0 : index
    %c0_4 = arith.constant 0 : index
    %3 = vector.load %arg3[%c0_3, %c0_4] : memref<3x256xf32, #tpu.memory_space<vmem>>, vector<1x256xf32>
    %4 = vector.broadcast %3 : vector<1x256xf32> to vector<8x256xf32>
    %5 = arith.addf %2, %4 : vector<8x256xf32>
    %6 = arith.mulf %5, %5 : vector<8x256xf32>
    %c0_5 = arith.constant 0 : index
    %c0_6 = arith.constant 0 : index
    %7 = vector.load %arg4[%c0_5, %c0_6] : memref<256x256xf32, #tpu.memory_space<vmem>>, vector<256x256xf32>
    %cst_7 = arith.constant dense<0.000000e+00> : vector<8x256xf32>
    %8 = tpu.matmul %6, %7, %cst_7 {dimension_numbers = #tpu.dot_dimension_numbers<[1], [0], [0], [1], [0, 0, 1, 1], [], []>} : vector<8x256xf32>, vector<256x256xf32>, vector<8x256xf32> -> vector<8x256xf32>
    %cst_8 = arith.constant 9.99999974E-6 : f32
    %9 = vector.broadcast %cst_8 : f32 to vector<8x256xf32>
    %10 = arith.addf %8, %9 : vector<8x256xf32>
    %11 = math.rsqrt %10 : vector<8x256xf32>
    %12 = arith.mulf %5, %11 : vector<8x256xf32>
    %c1 = arith.constant 1 : index
    %c0_9 = arith.constant 0 : index
    %13 = vector.load %arg3[%c1, %c0_9] : memref<3x256xf32, #tpu.memory_space<vmem>>, vector<1x256xf32>
    %14 = vector.broadcast %13 : vector<1x256xf32> to vector<8x256xf32>
    %15 = arith.mulf %12, %14 : vector<8x256xf32>
    %c2 = arith.constant 2 : index
    %c0_10 = arith.constant 0 : index
    %16 = vector.load %arg3[%c2, %c0_10] : memref<3x256xf32, #tpu.memory_space<vmem>>, vector<1x256xf32>
    %17 = vector.broadcast %16 : vector<1x256xf32> to vector<8x256xf32>
    %18 = arith.addf %15, %17 : vector<8x256xf32>
    %c0_11 = arith.constant 0 : index
    %c0_12 = arith.constant 0 : index
    %19 = vector.load %arg5[%c0_11, %c0_12] : memref<8x256xf32, #tpu.memory_space<vmem>>, vector<8x256xf32>
    tpu.vector_store %arg5[%c0_11, %c0_12], %18 {strides = array<i32>} : memref<8x256xf32, #tpu.memory_space<vmem>>, vector<8x256xf32>,
    return
  }
  func.func @transform_0(%arg0: i32) -> (i32, i32) {
    %c0_i32 = arith.constant 0 : i32
    %c0_i32_0 = arith.constant 0 : i32
    return %arg0, %c0_i32 : i32, i32
  }
  func.func @transform_1(%arg0: i32) -> (i32, i32) {
    %c0_i32 = arith.constant 0 : i32
    %c0_i32_0 = arith.constant 0 : i32
    %c0_i32_1 = arith.constant 0 : i32
    return %c0_i32, %c0_i32_0 : i32, i32
  }
  func.func @transform_2(%arg0: i32) -> (i32, i32) {
    %c0_i32 = arith.constant 0 : i32
    %c0_i32_0 = arith.constant 0 : i32
    %c0_i32_1 = arith.constant 0 : i32
    return %c0_i32, %c0_i32_0 : i32, i32
  }
  func.func @transform_3(%arg0: i32) -> (i32, i32) {
    %c0_i32 = arith.constant 0 : i32
    %c0_i32_0 = arith.constant 0 : i32
    %c0_i32_1 = arith.constant 0 : i32
    return %c0_i32, %c0_i32_0 : i32, i32
  }
  func.func @transform_4(%arg0: i32) -> (i32, i32) {
    %c0_i32 = arith.constant 0 : i32
    %c0_i32_0 = arith.constant 0 : i32
    return %arg0, %c0_i32 : i32, i32
  }
}

</mosaic_0001>

<llo_original>
// kernel: tile.18
$region0: #{tile.18}
  #allocation0 [shape = 's32[1]{0}', space=sflag, size = 0x4, scoped, tag = 'scoped memory for tile.18']
  %s0 = inlined_call_operand.vmem [shape: f32[32], index: 0, kind: input, shape index: {}]
  %s1 = inlined_call_operand.vmem [shape: f32[8,32], index: 1, kind: output, shape index: {}]
  // Predicated region
  $region2: #{tile.18} parent=0 // pred_check
    _
  $region3: #{tile.18} parent=0 // pred_check_branch
    %3 = sbr.rel (0) target = $region5
  $region4: #{tile.18} parent=0 // pred_region
    _
  $region5: #{tile.18} parent=0 // pred_fallthru
    _
  %v4 = vld [vmem:[%s0] ss:$0 sm:$0xff]
  %5 = vst [vmem:[%s1] sm:$0xff] %v4

// kernel: tile.27
$region0: #{tile.27}
  %s0 = inlined_call_operand.vmem [shape: f32[8,32], index: 0, kind: input, shape index: {}]
  %s1 = inlined_call_operand.vmem [shape: f32[1,256], index: 1, kind: output, shape index: {}]
  $region1: #{tile.27} parent=0
    #allocation0 [shape = 'u8[8192]{0}', space=vmem, size = 0x2000, scoped, tag = 'scoped mem for output reshape']
    %s2 = smov 3
    %v3 = vld [vmem:[%s0] ss:$4 sm:%s2]
    %vm4 = vcmask 261120
    %5 = vst.msk [vmem:[#allocation0] ss:$8 sm:$0x3] %vm4, %v3
    %s6 = scalar_lea.vmem %s0, 3
    %s7 = smov 3
    %v8 = vld [vmem:[%s6] ss:$4 sm:%s7]
    %9 = vrot.lane.b32.xlu0 %v8, 96
    %v10 = vpop.permute.xlu0 %9
    %vm11 = vcmask 1048320
    %12 = vst.msk [vmem:[#allocation0] ss:$8 sm:$0x3] %vm11, %v10
    %s13 = scalar_lea.vmem %s0, 2
    %s14 = smov 3
    %v15 = vld [vmem:[%s13] ss:$4 sm:%s14]
    %16 = vrot.lane.b32.xlu0 %v15, 64
    %v17 = vpop.permute.xlu0 %16
    %vm18 = vcmask 785920
    %19 = vst.msk [vmem:[#allocation0] ss:$8 sm:$0x3] %vm18, %v17
    %s20 = scalar_lea.vmem %s0, 1
    %s21 = smov 3
    %v22 = vld [vmem:[%s20] ss:$4 sm:%s21]
    %23 = vrot.lane.b32.xlu0 %v22, 32
    %v24 = vpop.permute.xlu0 %23
    %vm25 = vcmask 523520
    %26 = vst.msk [vmem:[#allocation0] ss:$8 sm:$0x3] %vm25, %v24
    %s28 = ssub.s32 2, 1
    %v29 = vld [vmem:[#allocation0] sm:%s28]
    %s31 = ssub.s32 2, 1
    %32 = vst [vmem:[%s1] sm:%s31] %v29
    %s33 = scalar_lea.vmem [#allocation0], 8
    %v34 = vld [vmem:[%s33] sm:%s28]
    %s36 = ssub.s32 2, 1
    %s37 = scalar_lea.vmem %s1, 1
    %38 = vst [vmem:[%s37] sm:%s36] %v34

// kernel: embedding_linear.1
$region0: #{embedding_linear.1}
  #allocation0 [shape = 'u32[]', space=smem, size = 0x4, offset = 0x4, fixed_abs, tag = 'smem constant byte address 0x4 - core index']
  #allocation1 [shape = 'u32[72,128]{1,0:T(1,128)}', space=vmem, size = 0x9000, scoped, tag = 'internal scratch']
  %s0 = inlined_call_operand.vmem [shape: f32[8,128], index: 0, kind: input, shape index: {}]
  %s1 = inlined_call_operand.vmem [shape: f32[128,256], index: 1, kind: input, shape index: {}]
  %s2 = inlined_call_operand.vmem [shape: f32[3,256], index: 2, kind: input, shape index: {}]
  %s3 = inlined_call_operand.vmem [shape: f32[256,256], index: 3, kind: input, shape index: {}]
  %s4 = inlined_call_operand.vmem [shape: f32[8,256], index: 4, kind: output, shape index: {}]
  %s5 = sld [smem:[#allocation0]]
  $region26: #{embedding_linear.1} parent=0
    _
  %s7 = ssub.s32 1, %s5
  %s8 = scalar_select 0, %s7, %s5
  // Predicated region
  $region2: #{embedding_linear.1} parent=0 // pred_check
    _
  $region3: #{embedding_linear.1} parent=0 // pred_check_branch
    %10 = sbr.rel (0) target = $region5
  $region4: #{embedding_linear.1} parent=0 // pred_region
    _
  $region5: #{embedding_linear.1} parent=0 // pred_fallthru
    _
  // Predicated region
  $region6: #{embedding_linear.1} parent=0 // pred_check
    _
  $region7: #{embedding_linear.1} parent=0 // pred_check_branch
    %12 = sbr.rel (0) target = $region9
  $region8: #{embedding_linear.1} parent=0 // pred_region
    _
  $region9: #{embedding_linear.1} parent=0 // pred_fallthru
    _
  // Predicated region
  $region10: #{embedding_linear.1} parent=0 // pred_check
    _
  $region11: #{embedding_linear.1} parent=0 // pred_check_branch
    %14 = sbr.rel (0) target = $region13
  $region12: #{embedding_linear.1} parent=0 // pred_region
    _
  $region13: #{embedding_linear.1} parent=0 // pred_fallthru
    _
  // Predicated region
  $region14: #{embedding_linear.1} parent=0 // pred_check
    _
  $region15: #{embedding_linear.1} parent=0 // pred_check_branch
    %16 = sbr.rel (0) target = $region17
  $region16: #{embedding_linear.1} parent=0 // pred_region
    _
  $region17: #{embedding_linear.1} parent=0 // pred_fallthru
    _
  %v17 = vld [vmem:[%s0] sm:$0xff]
  %v18 = vld [vmem:[%s1] sm:$0xff]
  %v19 = vld [vmem:[%s1 + $0x8] sm:$0xff]
  %v20 = vld [vmem:[%s1 + $0x10] sm:$0xff]
  %v21 = vld [vmem:[%s1 + $0x18] sm:$0xff]
  %v22 = vld [vmem:[%s1 + $0x20] sm:$0xff]
  %v23 = vld [vmem:[%s1 + $0x28] sm:$0xff]
  %v24 = vld [vmem:[%s1 + $0x30] sm:$0xff]
  %v25 = vld [vmem:[%s1 + $0x38] sm:$0xff]
  %v26 = vld [vmem:[%s1 + $0x40] sm:$0xff]
  %v27 = vld [vmem:[%s1 + $0x48] sm:$0xff]
  %v28 = vld [vmem:[%s1 + $0x50] sm:$0xff]
  %v29 = vld [vmem:[%s1 + $0x58] sm:$0xff]
  %v30 = vld [vmem:[%s1 + $0x60] sm:$0xff]
  %v31 = vld [vmem:[%s1 + $0x68] sm:$0xff]
  %v32 = vld [vmem:[%s1 + $0x70] sm:$0xff]
  %v33 = vld [vmem:[%s1 + $0x78] sm:$0xff]
  %v34 = vld [vmem:[%s1 + $0x80] sm:$0xff]
  %v35 = vld [vmem:[%s1 + $0x88] sm:$0xff]
  %v36 = vld [vmem:[%s1 + $0x90] sm:$0xff]
  %v37 = vld [vmem:[%s1 + $0x98] sm:$0xff]
  %v38 = vld [vmem:[%s1 + $0xa0] sm:$0xff]
  %v39 = vld [vmem:[%s1 + $0xa8] sm:$0xff]
  %v40 = vld [vmem:[%s1 + $0xb0] sm:$0xff]
  %v41 = vld [vmem:[%s1 + $0xb8] sm:$0xff]
  %v42 = vld [vmem:[%s1 + $0xc0] sm:$0xff]
  %v43 = vld [vmem:[%s1 + $0xc8] sm:$0xff]
  %v44 = vld [vmem:[%s1 + $0xd0] sm:$0xff]
  %v45 = vld [vmem:[%s1 + $0xd8] sm:$0xff]
  %v46 = vld [vmem:[%s1 + $0xe0] sm:$0xff]
  %v47 = vld [vmem:[%s1 + $0xe8] sm:$0xff]
  %v48 = vld [vmem:[%s1 + $0xf0] sm:$0xff]
  %v49 = vld [vmem:[%s1 + $0xf8] sm:$0xff]
  %v50 = vld [vmem:[%s2] ss:$4 sm:$0x3]
  %v52 = vperm.slane %v50, 0
  %v53 = vperm.slane %v50, 1
  %56 = vmatpush.msra.mxu0 %v48
  %57 = vmatpush.msra.mxu0 %v46
  %58 = vmatpush.msra.mxu0 %v44
  %59 = vmatpush.msra.mxu0 %v42
  %60 = vmatpush.msra.mxu0 %v40
  %61 = vmatpush.msra.mxu0 %v38
  %62 = vmatpush.msra.mxu0 %v36
  %63 = vmatpush.msra.mxu0 %v34
  %64 = vmatpush.msra.mxu0 %v32
  %65 = vmatpush.msra.mxu0 %v30
  %66 = vmatpush.msra.mxu0 %v28
  %67 = vmatpush.msra.mxu0 %v26
  %68 = vmatpush.msra.mxu0 %v24
  %69 = vmatpush.msra.mxu0 %v22
  %70 = vmatpush.msra.mxu0 %v20
  %71 = vmatpush.msra.mxu0 %v18
  %72 = vmatmul.f32.gmra.mxu0 %v17
  %v73 = vpop.f32.mrf.mxu0
  %v74 = vadd.f32 %v52, %v73
  %75 = vdwg.mxu0
  %76 = vmatpush.msra.mxu0 %v49
  %77 = vmatpush.msra.mxu0 %v47
  %78 = vmatpush.msra.mxu0 %v45
  %79 = vmatpush.msra.mxu0 %v43
  %80 = vmatpush.msra.mxu0 %v41
  %81 = vmatpush.msra.mxu0 %v39
  %82 = vmatpush.msra.mxu0 %v37
  %83 = vmatpush.msra.mxu0 %v35
  %84 = vmatpush.msra.mxu0 %v33
  %85 = vmatpush.msra.mxu0 %v31
  %86 = vmatpush.msra.mxu0 %v29
  %87 = vmatpush.msra.mxu0 %v27
  %88 = vmatpush.msra.mxu0 %v25
  %89 = vmatpush.msra.mxu0 %v23
  %90 = vmatpush.msra.mxu0 %v21
  %91 = vmatpush.msra.mxu0 %v19
  %92 = vmatmul.f32.gmra.mxu0 %v17
  %v93 = vpop.f32.mrf.mxu0
  %v94 = vadd.f32 %v53, %v93
  %95 = vdwg.mxu0
  %v96 = vmul.f32 %v74, %v74
  %v97 = vmul.f32 %v94, %v94
  %v98 = vld [vmem:[%s3] sm:$0xff]
  %v99 = vld [vmem:[%s3 + $0x8] sm:$0xff]
  %v100 = vld [vmem:[%s3 + $0x10] sm:$0xff]
  %v101 = vld [vmem:[%s3 + $0x18] sm:$0xff]
  %v102 = vld [vmem:[%s3 + $0x20] sm:$0xff]
  %v103 = vld [vmem:[%s3 + $0x28] sm:$0xff]
  %v104 = vld [vmem:[%s3 + $0x30] sm:$0xff]
  %v105 = vld [vmem:[%s3 + $0x38] sm:$0xff]
  %v106 = vld [vmem:[%s3 + $0x40] sm:$0xff]
  %v107 = vld [vmem:[%s3 + $0x48] sm:$0xff]
  %v108 = vld [vmem:[%s3 + $0x50] sm:$0xff]
  %v109 = vld [vmem:[%s3 + $0x58] sm:$0xff]
  %v110 = vld [vmem:[%s3 + $0x60] sm:$0xff]
  %v111 = vld [vmem:[%s3 + $0x68] sm:$0xff]
  %v112 = vld [vmem:[%s3 + $0x70] sm:$0xff]
  %v113 = vld [vmem:[%s3 + $0x78] sm:$0xff]
  %v114 = vld [vmem:[%s3 + $0x80] sm:$0xff]
  %v115 = vld [vmem:[%s3 + $0x88] sm:$0xff]
  %v116 = vld [vmem:[%s3 + $0x90] sm:$0xff]
  %v117 = vld [vmem:[%s3 + $0x98] sm:$0xff]
  %v118 = vld [vmem:[%s3 + $0xa0] sm:$0xff]
  %v119 = vld [vmem:[%s3 + $0xa8] sm:$0xff]
  %v120 = vld [vmem:[%s3 + $0xb0] sm:$0xff]
  %v121 = vld [vmem:[%s3 + $0xb8] sm:$0xff]
  %v122 = vld [vmem:[%s3 + $0xc0] sm:$0xff]
  %v123 = vld [vmem:[%s3 + $0xc8] sm:$0xff]
  %v124 = vld [vmem:[%s3 + $0xd0] sm:$0xff]
  %v125 = vld [vmem:[%s3 + $0xd8] sm:$0xff]
  %v126 = vld [vmem:[%s3 + $0xe0] sm:$0xff]
  %v127 = vld [vmem:[%s3 + $0xe8] sm:$0xff]
  %v128 = vld [vmem:[%s3 + $0xf0] sm:$0xff]
  %v129 = vld [vmem:[%s3 + $0xf8] sm:$0xff]
  %v130 = vld [vmem:[%s3 + $0x100] sm:$0xff]
  %v131 = vld [vmem:[%s3 + $0x108] sm:$0xff]
  %v132 = vld [vmem:[%s3 + $0x110] sm:$0xff]
  %v133 = vld [vmem:[%s3 + $0x118] sm:$0xff]
  %v134 = vld [vmem:[%s3 + $0x120] sm:$0xff]
  %v135 = vld [vmem:[%s3 + $0x128] sm:$0xff]
  %v136 = vld [vmem:[%s3 + $0x130] sm:$0xff]
  %v137 = vld [vmem:[%s3 + $0x138] sm:$0xff]
  %v138 = vld [vmem:[%s3 + $0x140] sm:$0xff]
  %v139 = vld [vmem:[%s3 + $0x148] sm:$0xff]
  %v140 = vld [vmem:[%s3 + $0x150] sm:$0xff]
  %v141 = vld [vmem:[%s3 + $0x158] sm:$0xff]
  %v142 = vld [vmem:[%s3 + $0x160] sm:$0xff]
  %v143 = vld [vmem:[%s3 + $0x168] sm:$0xff]
  %v144 = vld [vmem:[%s3 + $0x170] sm:$0xff]
  %v145 = vld [vmem:[%s3 + $0x178] sm:$0xff]
  %v146 = vld [vmem:[%s3 + $0x180] sm:$0xff]
  %v147 = vld [vmem:[%s3 + $0x188] sm:$0xff]
  %v148 = vld [vmem:[%s3 + $0x190] sm:$0xff]
  %v149 = vld [vmem:[%s3 + $0x198] sm:$0xff]
  %v150 = vld [vmem:[%s3 + $0x1a0] sm:$0xff]
  %v151 = vld [vmem:[%s3 + $0x1a8] sm:$0xff]
  %v152 = vld [vmem:[%s3 + $0x1b0] sm:$0xff]
  %v153 = vld [vmem:[%s3 + $0x1b8] sm:$0xff]
  %v154 = vld [vmem:[%s3 + $0x1c0] sm:$0xff]
  %v155 = vld [vmem:[%s3 + $0x1c8] sm:$0xff]
  %v156 = vld [vmem:[%s3 + $0x1d0] sm:$0xff]
  %v157 = vld [vmem:[%s3 + $0x1d8] sm:$0xff]
  %v158 = vld [vmem:[%s3 + $0x1e0] sm:$0xff]
  %v159 = vld [vmem:[%s3 + $0x1e8] sm:$0xff]
  %v160 = vld [vmem:[%s3 + $0x1f0] sm:$0xff]
  %v161 = vld [vmem:[%s3 + $0x1f8] sm:$0xff]
  %162 = vmatpush.msra.mxu0 %v128
  %163 = vmatpush.msra.mxu0 %v126
  %164 = vmatpush.msra.mxu0 %v124
  %165 = vmatpush.msra.mxu0 %v122
  %166 = vmatpush.msra.mxu0 %v120
  %167 = vmatpush.msra.mxu0 %v118
  %168 = vmatpush.msra.mxu0 %v116
  %169 = vmatpush.msra.mxu0 %v114
  %170 = vmatpush.msra.mxu0 %v112
  %171 = vmatpush.msra.mxu0 %v110
  %172 = vmatpush.msra.mxu0 %v108
  %173 = vmatpush.msra.mxu0 %v106
  %174 = vmatpush.msra.mxu0 %v104
  %175 = vmatpush.msra.mxu0 %v102
  %176 = vmatpush.msra.mxu0 %v100
  %177 = vmatpush.msra.mxu0 %v98
  %178 = vmatmul.f32.gmra.mxu0 %v96
  %v179 = vpop.f32.mrf.mxu0
  %v180 = vadd.f32 1e-05, %v179
  %181 = vdwg.mxu0
  %182 = vmatpush.msra.mxu0 %v160
  %183 = vmatpush.msra.mxu0 %v158
  %184 = vmatpush.msra.mxu0 %v156
  %185 = vmatpush.msra.mxu0 %v154
  %186 = vmatpush.msra.mxu0 %v152
  %187 = vmatpush.msra.mxu0 %v150
  %188 = vmatpush.msra.mxu0 %v148
  %189 = vmatpush.msra.mxu0 %v146
  %190 = vmatpush.msra.mxu0 %v144
  %191 = vmatpush.msra.mxu0 %v142
  %192 = vmatpush.msra.mxu0 %v140
  %193 = vmatpush.msra.mxu0 %v138
  %194 = vmatpush.msra.mxu0 %v136
  %195 = vmatpush.msra.mxu0 %v134
  %196 = vmatpush.msra.mxu0 %v132
  %197 = vmatpush.msra.mxu0 %v130
  %198 = vmatmul.f32.gmra.mxu0 %v97
  %v199 = vpop.f32.mrf.mxu0
  %v200 = vadd.f32 %v180, %v199
  %201 = vdwg.mxu0
  %202 = vmatpush.msra.mxu0 %v129
  %203 = vmatpush.msra.mxu0 %v127
  %204 = vmatpush.msra.mxu0 %v125
  %205 = vmatpush.msra.mxu0 %v123
  %206 = vmatpush.msra.mxu0 %v121
  %207 = vmatpush.msra.mxu0 %v119
  %208 = vmatpush.msra.mxu0 %v117
  %209 = vmatpush.msra.mxu0 %v115
  %210 = vmatpush.msra.mxu0 %v113
  %211 = vmatpush.msra.mxu0 %v111
  %212 = vmatpush.msra.mxu0 %v109
  %213 = vmatpush.msra.mxu0 %v107
  %214 = vmatpush.msra.mxu0 %v105
  %215 = vmatpush.msra.mxu0 %v103
  %216 = vmatpush.msra.mxu0 %v101
  %217 = vmatpush.msra.mxu0 %v99
  %218 = vmatmul.f32.gmra.mxu0 %v96
  %v219 = vpop.f32.mrf.mxu0
  %v220 = vadd.f32 1e-05, %v219
  %221 = vdwg.mxu0
  %222 = vmatpush.msra.mxu0 %v161
  %223 = vmatpush.msra.mxu0 %v159
  %224 = vmatpush.msra.mxu0 %v157
  %225 = vmatpush.msra.mxu0 %v155
  %226 = vmatpush.msra.mxu0 %v153
  %227 = vmatpush.msra.mxu0 %v151
  %228 = vmatpush.msra.mxu0 %v149
  %229 = vmatpush.msra.mxu0 %v147
  %230 = vmatpush.msra.mxu0 %v145
  %231 = vmatpush.msra.mxu0 %v143
  %232 = vmatpush.msra.mxu0 %v141
  %233 = vmatpush.msra.mxu0 %v139
  %234 = vmatpush.msra.mxu0 %v137
  %235 = vmatpush.msra.mxu0 %v135
  %236 = vmatpush.msra.mxu0 %v133
  %237 = vmatpush.msra.mxu0 %v131
  %238 = vmatmul.f32.gmra.mxu0 %v97
  %v239 = vpop.f32.mrf.mxu0
  %v240 = vadd.f32 %v220, %v239
  %241 = vdwg.mxu0
  %v242 = vrsqrt.pop %v200
  %v243 = vmul.f32 %v242, %v200
  %v244 = vmul.f32 %v243, %v242
  %v245 = vmul.f32 0.5, %v244
  %v246 = vsub.f32 1.5, %v245
  %v247 = vmul.f32 %v242, %v246
  %vm248 = vweird.f32 %v200
  %vm249 = vweird.f32 %v242
  %vm250 = vmor %vm248, %vm249
  %v251 = vsel %vm250, %v242, %v247
  %v252 = vrsqrt.pop %v240
  %v253 = vmul.f32 %v252, %v240
  %v254 = vmul.f32 %v253, %v252
  %v255 = vmul.f32 0.5, %v254
  %v256 = vsub.f32 1.5, %v255
  %v257 = vmul.f32 %v252, %v256
  %vm258 = vweird.f32 %v240
  %vm259 = vweird.f32 %v252
  %vm260 = vmor %vm258, %vm259
  %v261 = vsel %vm260, %v252, %v257
  %v262 = vmul.f32 %v74, %v251
  %v263 = vmul.f32 %v94, %v261
  %s264 = scalar_lea.vmem %s2, 1
  %v265 = vld [vmem:[%s264] ss:$4 sm:$0x3]
  %v267 = vperm.slane %v265, 0
  %v268 = vperm.slane %v265, 1
  %v271 = vmul.f32 %v262, %v267
  %v272 = vmul.f32 %v263, %v268
  %s273 = scalar_lea.vmem %s2, 2
  %v274 = vld [vmem:[%s273] ss:$4 sm:$0x3]
  %v276 = vperm.slane %v274, 0
  %v277 = vperm.slane %v274, 1
  %v280 = vadd.f32 %v271, %v276
  %v281 = vadd.f32 %v272, %v277
  %282 = vst [vmem:[%s4] sm:$0xff] %v280
  %283 = vst [vmem:[%s4 + $0x8] sm:$0xff] %v281
  // Predicated region
  $region18: #{embedding_linear.1} parent=0 // pred_check
    _
  $region19: #{embedding_linear.1} parent=0 // pred_check_branch
    %285 = sbr.rel (0) target = $region21
  $region20: #{embedding_linear.1} parent=0 // pred_region
    _
  $region21: #{embedding_linear.1} parent=0 // pred_fallthru
    _
  // Predicated region
  $region22: #{embedding_linear.1} parent=0 // pred_check
    _
  $region23: #{embedding_linear.1} parent=0 // pred_check_branch
    %287 = sbr.rel (0) target = $region25
  $region24: #{embedding_linear.1} parent=0 // pred_region
    _
  $region25: #{embedding_linear.1} parent=0 // pred_fallthru
    _

</llo_original>
